<compile_context>
chip_gen: v6e
topology: v6e:2x2x1
jax: 0.10.0
libtpu: 0.0.40
codegen_flags: <defaults>
</compile_context>

<pallas_src>
import jax
import jax.numpy as jnp
from jax import lax
from jax.experimental import pallas as pl
from jax.experimental.pallas import tpu as pltpu

_MiB = 1024 * 1024


def find_multiple(n: int, k: int) -> int:
    if n % k == 0:
        return n
    return n + k - n % k


def _pick_hidden_tile(n_hidden: int, tn_target: int) -> int:
    """Largest multiple of 256 that divides n_hidden and is <= tn_target."""
    assert n_hidden % 256 == 0, "n_hidden must be a multiple of 256 (module guarantees this)"
    best = 256
    t = 256
    while t <= min(tn_target, n_hidden):
        if n_hidden % t == 0:
            best = t
        t += 256
    return best


# ---------------------------------------------------------------------------
# Chip profiling & per-generation tile selection
# ---------------------------------------------------------------------------
def _chip_profile():
    """(device_kind_lowercase, vmem_capacity_bytes); robust to query failures."""
    kind = ""
    try:
        kind = jax.devices()[0].device_kind.lower()
    except Exception:
        pass
    vmem = 128 * _MiB
    try:
        vmem = int(pltpu.get_tpu_info().vmem_capacity_bytes)
    except Exception:
        pass
    return kind, vmem


def _buffer_bytes(tm, tn, n_embd, in_bytes, out_bytes, x_bufs):
    x_b = x_bufs * tm * n_embd * in_bytes          # x tile (single-buffered)
    w12_b = 2 * (2 * tn) * n_embd * in_bytes       # fused gate/up slab, double-buffered
    w3_b = 2 * tn * n_embd * in_bytes              # W3^T row slab, double-buffered
    o_b = 2 * tm * n_embd * out_bytes              # output tile, double-buffered
    acc_b = tm * n_embd * 4                        # f32 accumulator scratch
    return x_b + w12_b + w3_b + o_b + acc_b


def _choose_tiles(M, n_embd, n_hidden, in_dtype, out_dtype):
    """Per-generation (tm, tn, row_align, vmem_limit_bytes)."""
    kind, vmem_cap = _chip_profile()
    small_vmem = vmem_cap <= 80 * _MiB                      # v7x-like: 64 MiB / TC, 2 TCs
    is_v5e = ("v5 lite" in kind) or ("v5e" in kind) or ("v5litepod" in kind)

    in_bytes = jnp.dtype(in_dtype).itemsize
    out_bytes = jnp.dtype(out_dtype).itemsize
    row_align = 16 if in_bytes < 4 else 8                   # bf16 packs 2 rows / sublane

    if small_vmem:        # v7x: roofline at modest tm; VMEM is the scarce resource
        tm_target, tn_target = 512, 512
        budget = vmem_cap - 20 * _MiB
    elif is_v5e:          # v5e: tm=256 is roofline-adequate; larger tn cuts acc RMW traffic
        tm_target, tn_target = 256, 1024
        budget = vmem_cap - 24 * _MiB
    else:                 # v6e (default, 128 MiB VMEM): fill the MXU roofline
        tm_target, tn_target = 1024, 512
        budget = vmem_cap - 24 * _MiB
    budget = max(budget, 32 * _MiB)

    tm = min(tm_target, find_multiple(M, row_align))
    tn = _pick_hidden_tile(n_hidden, tn_target)

    # Shrink until the pipelined footprint fits the budget (handles f32 weights
    # at production widths that previously exceeded the hardcoded 48 MiB cap).
    while _buffer_bytes(tm, tn, n_embd, in_bytes, out_bytes, x_bufs=1) > budget:
        if tn > 256:
            tn = _pick_hidden_tile(n_hidden, tn - 256)
        else:
            new_tm = find_multiple(max(row_align, tm // 2), row_align)
            if new_tm >= tm:
                break
            tm = new_tm

    # 2-TensorCore chips: make sure the "parallel" token axis has >=2 tiles so
    # both cores get work at small M (decode).
    if small_vmem and find_multiple(M, tm) // tm < 2 and M >= 2 * row_align:
        tm = find_multiple((M + 1) // 2, row_align)

    return tm, tn, row_align, int(budget)


# ---------------------------------------------------------------------------
# Weight preparation (do once at weight-load time in a real model)
# ---------------------------------------------------------------------------
def prepare_mlp_weights(w1, w2, w3, tn):
    """w1,w2: (n_hidden, n_embd); w3: (n_embd, n_hidden).

    Returns:
      w12: (2*n_hidden, n_embd) tile-interleaved [w1_tile0; w2_tile0; w1_tile1; ...]
      w3t: (n_hidden, n_embd)   c_proj weight transposed -> contiguous row slabs.
    """
    n_hidden, n_embd = w1.shape
    assert n_hidden % tn == 0
    nt = n_hidden // tn
    w12 = jnp.concatenate(
        [w1.reshape(nt, tn, n_embd), w2.reshape(nt, tn, n_embd)], axis=1
    ).reshape(2 * n_hidden, n_embd)
    w3t = jnp.transpose(w3)
    return w12, w3t


# ---------------------------------------------------------------------------
# Kernel
# ---------------------------------------------------------------------------
def mlp_kernel(x_ref, w12_ref, w3t_ref, o_ref, acc_ref):
    """One (token tile, hidden tile) step of the SwiGLU MLP.

    x_ref   : (tm, n_embd)
    w12_ref : (2*tn, n_embd)  rows [0:tn] = c_fc1 slice, [tn:2tn] = c_fc2 slice
    w3t_ref : (tn, n_embd)    c_proj.weight.T hidden-slice (contiguous rows)
    o_ref   : (tm, n_embd)
    acc_ref : (tm, n_embd) f32 accumulator, resident across the hidden axis
    """
    j = pl.program_id(1)

    @pl.when(j == 0)
    def _():
        acc_ref[...] = jnp.zeros_like(acc_ref)

    x = x_ref[...]

    # Fused gate/up projection: single NT matmul (contract x dim 1 with w dim 1).
    gu = lax.dot_general(
        x, w12_ref[...],
        dimension_numbers=(((1,), (1,)), ((), ())),
        preferred_element_type=jnp.float32)
    tn = gu.shape[1] // 2
    gate = gu[:, :tn]          # static lane-aligned slices (tn is a multiple of 256)
    up = gu[:, tn:]

    # SiLU(gate) * up in f32, only for this hidden slice (no full (tm, n_hidden)
    # intermediate is ever materialized).
    h = (gate * jax.nn.sigmoid(gate)) * up

    # Partial down-projection: (tm, tn) @ (tn, n_embd), accumulated in f32.
    acc_ref[...] += jnp.dot(
        h.astype(w3t_ref.dtype), w3t_ref[...],
        preferred_element_type=jnp.float32)

    @pl.when(j == pl.num_programs(1) - 1)
    def _():
        o_ref[...] = acc_ref[...].astype(o_ref.dtype)


def _build_mlp_call(*, M_pad, n_embd, n_hidden, tm, tn, in_dtype, out_dtype,
                    vmem_limit_bytes, single_buffer_x):
    grid = (M_pad // tm, n_hidden // tn)

    if single_buffer_x:
        # x block index is constant across the hidden axis -> no point double-buffering.
        x_spec = pl.BlockSpec((tm, n_embd), lambda i, j: (i, 0),
                              pipeline_mode=pl.Buffered(1))
    else:
        x_spec = pl.BlockSpec((tm, n_embd), lambda i, j: (i, 0))

    in_bytes = jnp.dtype(in_dtype).itemsize
    out_bytes = jnp.dtype(out_dtype).itemsize
    cost = pl.CostEstimate(
        flops=6 * M_pad * n_embd * n_hidden,
        transcendentals=M_pad * n_hidden,
        bytes_accessed=int(M_pad * n_embd * (in_bytes + out_bytes)
                           + 3 * n_embd * n_hidden * in_bytes * grid[0]),
    )

    return pl.pallas_call(
        mlp_kernel,
        out_shape=jax.ShapeDtypeStruct((M_pad, n_embd), out_dtype),
        grid_spec=pltpu.PrefetchScalarGridSpec(
            num_scalar_prefetch=0,
            grid=grid,
            in_specs=[
                x_spec,                                               # x token tile
                pl.BlockSpec((2 * tn, n_embd), lambda i, j: (j, 0)),  # fused W1/W2 slab
                pl.BlockSpec((tn, n_embd), lambda i, j: (j, 0)),      # W3^T row slab
            ],
            out_specs=pl.BlockSpec((tm, n_embd), lambda i, j: (i, 0)),
            scratch_shapes=[pltpu.VMEM((tm, n_embd), jnp.float32)],   # f32 accumulator
        ),
        compiler_params=pltpu.CompilerParams(
            dimension_semantics=("parallel", "arbitrary"),
            vmem_limit_bytes=int(vmem_limit_bytes),
        ),
        cost_estimate=cost,
    )


def mlp_pallas(x, w1, w2, w3):
    """x: [..., n_embd]; w1,w2: [n_hidden, n_embd]; w3: [n_embd, n_hidden] (nn.Linear layout)."""
    orig_shape = x.shape
    n_embd = orig_shape[-1]
    n_hidden = w1.shape[0]
    assert w1.shape == (n_hidden, n_embd)
    assert w2.shape == (n_hidden, n_embd)
    assert w3.shape == (n_embd, n_hidden)

    x2d = x.reshape(-1, n_embd)
    M = x2d.shape[0]

    tm, tn, _row_align, vmem_limit = _choose_tiles(M, n_embd, n_hidden, x.dtype, x.dtype)
    M_pad = find_multiple(M, tm)
    if M_pad != M:
        x2d = jnp.pad(x2d, ((0, M_pad - M), (0, 0)))

    # TODO(synk): in a real model, call prepare_mlp_weights once at weight-load time
    # (and optionally store W1/W2/W3 as fp8 on v7x / int8 on v5e-v6e with per-tile
    # scales) instead of re-deriving the fused/transposed weights per forward call.
    w12, w3t = prepare_mlp_weights(w1, w2, w3, tn)

    call_kwargs = dict(M_pad=M_pad, n_embd=n_embd, n_hidden=n_hidden, tm=tm, tn=tn,
                       in_dtype=x.dtype, out_dtype=x.dtype,
                       vmem_limit_bytes=vmem_limit)
    try:
        out = _build_mlp_call(single_buffer_x=True, **call_kwargs)(x2d, w12, w3t)
    except Exception:
        # Fallback if this Pallas build rejects single-buffered BlockSpecs.
        out = _build_mlp_call(single_buffer_x=False, **call_kwargs)(x2d, w12, w3t)

    if M_pad != M:
        out = out[:M]
    return out.reshape(orig_shape)


def mlp_reference(x, w1, w2, w3):
    gate = x @ w1.T
    up = x @ w2.T
    h = jax.nn.silu(gate) * up
    return h @ w3.T


if __name__ == "__main__":
    # Small config consistent with the module's __init__ arithmetic:
    # n_embd=32 -> hidden_dim=128 -> n_hidden=int(2*128/3)=85 -> padded to 256
    B, T, n_embd = 2, 8, 32
    hidden_dim = 4 * n_embd
    n_hidden = find_multiple(int(2 * hidden_dim / 3), 256)  # 256

    key = jax.random.PRNGKey(0)
    kx, k1, k2, k3 = jax.random.split(key, 4)

    x = jax.random.normal(kx, (B, T, n_embd), dtype=jnp.float32)
    # nn.Linear weight shapes: (out_features, in_features)
    w1 = jax.random.normal(k1, (n_hidden, n_embd), dtype=jnp.float32) / jnp.sqrt(n_embd)
    w2 = jax.random.normal(k2, (n_hidden, n_embd), dtype=jnp.float32) / jnp.sqrt(n_embd)
    w3 = jax.random.normal(k3, (n_embd, n_hidden), dtype=jnp.float32) / jnp.sqrt(n_hidden)

    # f32 correctness check against the pure-JAX reference.
    out = jax.block_until_ready(mlp_pallas(x, w1, w2, w3))
    ref = mlp_reference(x, w1, w2, w3)
    assert out.shape == (B, T, n_embd)
    assert jnp.allclose(out, ref, atol=1e-4, rtol=1e-4), "mismatch vs reference"

    # bf16 path (production MXU dtype): smoke-test shape / finiteness.
    out_bf16 = jax.block_until_ready(
        mlp_pallas(x.astype(jnp.bfloat16), w1.astype(jnp.bfloat16),
                   w2.astype(jnp.bfloat16), w3.astype(jnp.bfloat16)))
    assert out_bf16.shape == (B, T, n_embd)
    assert bool(jnp.all(jnp.isfinite(out_bf16.astype(jnp.float32))))

    print("KERNEL_OK")
</pallas_src>

<mosaic_0001>
module attributes {stable_mosaic.version = 11 : i64} {
  func.func @mlp_kernel(%arg0: i32, %arg1: i32, %arg2: memref<16x32xf32, #tpu.memory_space<vmem>>, %arg3: memref<512x32xf32, #tpu.memory_space<vmem>>, %arg4: memref<256x32xf32, #tpu.memory_space<vmem>>, %arg5: memref<16x32xf32, #tpu.memory_space<vmem>>, %arg6: memref<16x32xf32, #tpu.memory_space<vmem>>) attributes {dimension_semantics = [#tpu.dimension_semantics<parallel>, #tpu.dimension_semantics<arbitrary>], iteration_bounds = array<i64: 1, 1>, scalar_prefetch = 0 : i64, scratch_operands = 1 : i64, tpu.core_type = #tpu.core_type<tc>, window_params = [{pipeline_mode = #tpu.pipeline_mode<synchronous>, transform_indices = @transform_0, window_bounds = array<i64: 16, 32>}, {transform_indices = @transform_1, window_bounds = array<i64: 512, 32>}, {transform_indices = @transform_2, window_bounds = array<i64: 256, 32>}, {transform_indices = @transform_3, window_bounds = array<i64: 16, 32>}]} {
    %c0_i32 = arith.constant 0 : i32
    %0 = arith.cmpi eq, %arg1, %c0_i32 : i32
    %1 = arith.extui %0 : i1 to i32
    %c0_i32_0 = arith.constant 0 : i32
    %2 = arith.cmpi ne, %1, %c0_i32_0 : i32
    scf.if %2 {
      %cst_14 = arith.constant 0.000000e+00 : f32
      %23 = vector.broadcast %cst_14 : f32 to vector<16x32xf32>
      %c0_15 = arith.constant 0 : index
      %c0_16 = arith.constant 0 : index
      %24 = vector.load %arg6[%c0_15, %c0_16] : memref<16x32xf32, #tpu.memory_space<vmem>>, vector<16x32xf32>
      tpu.vector_store %arg6[%c0_15, %c0_16], %23 {strides = array<i32>} : memref<16x32xf32, #tpu.memory_space<vmem>>, vector<16x32xf32>,
    } else {
    }
    %c0 = arith.constant 0 : index
    %c0_1 = arith.constant 0 : index
    %3 = vector.load %arg2[%c0, %c0_1] : memref<16x32xf32, #tpu.memory_space<vmem>>, vector<16x32xf32>
    %c0_2 = arith.constant 0 : index
    %c0_3 = arith.constant 0 : index
    %4 = vector.load %arg3[%c0_2, %c0_3] : memref<512x32xf32, #tpu.memory_space<vmem>>, vector<512x32xf32>
    %cst = arith.constant dense<0.000000e+00> : vector<16x512xf32>
    %5 = tpu.matmul %3, %4, %cst {dimension_numbers = #tpu.dot_dimension_numbers<[1], [1], [0], [0], [0, 0, 1, 0], [], []>} : vector<16x32xf32>, vector<512x32xf32>, vector<16x512xf32> -> vector<16x512xf32>
    %6 = vector.extract_strided_slice %5 {offsets = [0, 0], sizes = [16, 256], strides = [1, 1]} : vector<16x512xf32> to vector<16x256xf32>
    %7 = vector.extract_strided_slice %5 {offsets = [0, 256], sizes = [16, 256], strides = [1, 1]} : vector<16x512xf32> to vector<16x256xf32>
    %8 = arith.negf %6 : vector<16x256xf32>
    %9 = math.exp %8 : vector<16x256xf32>
    %cst_4 = arith.constant 1.000000e+00 : f32
    %10 = vector.broadcast %cst_4 : f32 to vector<16x256xf32>
    %11 = arith.addf %10, %9 : vector<16x256xf32>
    %12 = arith.divf %10, %11 : vector<16x256xf32>
    %13 = arith.mulf %6, %12 : vector<16x256xf32>
    %14 = arith.mulf %13, %7 : vector<16x256xf32>
    %c0_5 = arith.constant 0 : index
    %c0_6 = arith.constant 0 : index
    %15 = vector.load %arg6[%c0_5, %c0_6] : memref<16x32xf32, #tpu.memory_space<vmem>>, vector<16x32xf32>
    %c0_7 = arith.constant 0 : index
    %c0_8 = arith.constant 0 : index
    %16 = vector.load %arg4[%c0_7, %c0_8] : memref<256x32xf32, #tpu.memory_space<vmem>>, vector<256x32xf32>
    %cst_9 = arith.constant dense<0.000000e+00> : vector<16x32xf32>
    %17 = tpu.matmul %14, %16, %cst_9 {dimension_numbers = #tpu.dot_dimension_numbers<[1], [0], [0], [1], [0, 0, 1, 1], [], []>} : vector<16x256xf32>, vector<256x32xf32>, vector<16x32xf32> -> vector<16x32xf32>
    %18 = arith.addf %15, %17 : vector<16x32xf32>
    %c0_10 = arith.constant 0 : index
    %c0_11 = arith.constant 0 : index
    %19 = vector.load %arg6[%c0_10, %c0_11] : memref<16x32xf32, #tpu.memory_space<vmem>>, vector<16x32xf32>
    tpu.vector_store %arg6[%c0_10, %c0_11], %18 {strides = array<i32>} : memref<16x32xf32, #tpu.memory_space<vmem>>, vector<16x32xf32>,
    %c0_i32_12 = arith.constant 0 : i32
    %20 = arith.cmpi eq, %arg1, %c0_i32_12 : i32
    %21 = arith.extui %20 : i1 to i32
    %c0_i32_13 = arith.constant 0 : i32
    %22 = arith.cmpi ne, %21, %c0_i32_13 : i32
    scf.if %22 {
      %c0_14 = arith.constant 0 : index
      %c0_15 = arith.constant 0 : index
      %23 = vector.load %arg6[%c0_14, %c0_15] : memref<16x32xf32, #tpu.memory_space<vmem>>, vector<16x32xf32>
      %c0_16 = arith.constant 0 : index
      %c0_17 = arith.constant 0 : index
      %24 = vector.load %arg5[%c0_16, %c0_17] : memref<16x32xf32, #tpu.memory_space<vmem>>, vector<16x32xf32>
      tpu.vector_store %arg5[%c0_16, %c0_17], %23 {strides = array<i32>} : memref<16x32xf32, #tpu.memory_space<vmem>>, vector<16x32xf32>,
    } else {
    }
    return
  }
  func.func @transform_0(%arg0: i32, %arg1: i32) -> (i32, i32) {
    %c0_i32 = arith.constant 0 : i32
    %c0_i32_0 = arith.constant 0 : i32
    return %arg0, %c0_i32 : i32, i32
  }
  func.func @transform_1(%arg0: i32, %arg1: i32) -> (i32, i32) {
    %c0_i32 = arith.constant 0 : i32
    %c0_i32_0 = arith.constant 0 : i32
    return %arg1, %c0_i32 : i32, i32
  }
  func.func @transform_2(%arg0: i32, %arg1: i32) -> (i32, i32) {
    %c0_i32 = arith.constant 0 : i32
    %c0_i32_0 = arith.constant 0 : i32
    return %arg1, %c0_i32 : i32, i32
  }
  func.func @transform_3(%arg0: i32, %arg1: i32) -> (i32, i32) {
    %c0_i32 = arith.constant 0 : i32
    %c0_i32_0 = arith.constant 0 : i32
    return %arg0, %c0_i32 : i32, i32
  }
}

module attributes {stable_mosaic.version = 11 : i64} {
  func.func @mlp_kernel(%arg0: i32, %arg1: i32, %arg2: memref<16x32xf32, #tpu.memory_space<vmem>>, %arg3: memref<512x32xf32, #tpu.memory_space<vmem>>, %arg4: memref<256x32xf32, #tpu.memory_space<vmem>>, %arg5: memref<16x32xf32, #tpu.memory_space<vmem>>, %arg6: memref<16x32xf32, #tpu.memory_space<vmem>>) attributes {dimension_semantics = [#tpu.dimension_semantics<parallel>, #tpu.dimension_semantics<arbitrary>], iteration_bounds = array<i64: 1, 1>, scalar_prefetch = 0 : i64, scratch_operands = 1 : i64, tpu.core_type = #tpu.core_type<tc>, window_params = [{transform_indices = @transform_0, window_bounds = array<i64: 16, 32>}, {transform_indices = @transform_1, window_bounds = array<i64: 512, 32>}, {transform_indices = @transform_2, window_bounds = array<i64: 256, 32>}, {transform_indices = @transform_3, window_bounds = array<i64: 16, 32>}]} {
    %c0_i32 = arith.constant 0 : i32
    %0 = arith.cmpi eq, %arg1, %c0_i32 : i32
    %1 = arith.extui %0 : i1 to i32
    %c0_i32_0 = arith.constant 0 : i32
    %2 = arith.cmpi ne, %1, %c0_i32_0 : i32
    scf.if %2 {
      %cst_14 = arith.constant 0.000000e+00 : f32
      %23 = vector.broadcast %cst_14 : f32 to vector<16x32xf32>
      %c0_15 = arith.constant 0 : index
      %c0_16 = arith.constant 0 : index
      %24 = vector.load %arg6[%c0_15, %c0_16] : memref<16x32xf32, #tpu.memory_space<vmem>>, vector<16x32xf32>
      tpu.vector_store %arg6[%c0_15, %c0_16], %23 {strides = array<i32>} : memref<16x32xf32, #tpu.memory_space<vmem>>, vector<16x32xf32>,
    } else {
    }
    %c0 = arith.constant 0 : index
    %c0_1 = arith.constant 0 : index
    %3 = vector.load %arg2[%c0, %c0_1] : memref<16x32xf32, #tpu.memory_space<vmem>>, vector<16x32xf32>
    %c0_2 = arith.constant 0 : index
    %c0_3 = arith.constant 0 : index
    %4 = vector.load %arg3[%c0_2, %c0_3] : memref<512x32xf32, #tpu.memory_space<vmem>>, vector<512x32xf32>
    %cst = arith.constant dense<0.000000e+00> : vector<16x512xf32>
    %5 = tpu.matmul %3, %4, %cst {dimension_numbers = #tpu.dot_dimension_numbers<[1], [1], [0], [0], [0, 0, 1, 0], [], []>} : vector<16x32xf32>, vector<512x32xf32>, vector<16x512xf32> -> vector<16x512xf32>
    %6 = vector.extract_strided_slice %5 {offsets = [0, 0], sizes = [16, 256], strides = [1, 1]} : vector<16x512xf32> to vector<16x256xf32>
    %7 = vector.extract_strided_slice %5 {offsets = [0, 256], sizes = [16, 256], strides = [1, 1]} : vector<16x512xf32> to vector<16x256xf32>
    %8 = arith.negf %6 : vector<16x256xf32>
    %9 = math.exp %8 : vector<16x256xf32>
    %cst_4 = arith.constant 1.000000e+00 : f32
    %10 = vector.broadcast %cst_4 : f32 to vector<16x256xf32>
    %11 = arith.addf %10, %9 : vector<16x256xf32>
    %12 = arith.divf %10, %11 : vector<16x256xf32>
    %13 = arith.mulf %6, %12 : vector<16x256xf32>
    %14 = arith.mulf %13, %7 : vector<16x256xf32>
    %c0_5 = arith.constant 0 : index
    %c0_6 = arith.constant 0 : index
    %15 = vector.load %arg6[%c0_5, %c0_6] : memref<16x32xf32, #tpu.memory_space<vmem>>, vector<16x32xf32>
    %c0_7 = arith.constant 0 : index
    %c0_8 = arith.constant 0 : index
    %16 = vector.load %arg4[%c0_7, %c0_8] : memref<256x32xf32, #tpu.memory_space<vmem>>, vector<256x32xf32>
    %cst_9 = arith.constant dense<0.000000e+00> : vector<16x32xf32>
    %17 = tpu.matmul %14, %16, %cst_9 {dimension_numbers = #tpu.dot_dimension_numbers<[1], [0], [0], [1], [0, 0, 1, 1], [], []>} : vector<16x256xf32>, vector<256x32xf32>, vector<16x32xf32> -> vector<16x32xf32>
    %18 = arith.addf %15, %17 : vector<16x32xf32>
    %c0_10 = arith.constant 0 : index
    %c0_11 = arith.constant 0 : index
    %19 = vector.load %arg6[%c0_10, %c0_11] : memref<16x32xf32, #tpu.memory_space<vmem>>, vector<16x32xf32>
    tpu.vector_store %arg6[%c0_10, %c0_11], %18 {strides = array<i32>} : memref<16x32xf32, #tpu.memory_space<vmem>>, vector<16x32xf32>,
    %c0_i32_12 = arith.constant 0 : i32
    %20 = arith.cmpi eq, %arg1, %c0_i32_12 : i32
    %21 = arith.extui %20 : i1 to i32
    %c0_i32_13 = arith.constant 0 : i32
    %22 = arith.cmpi ne, %21, %c0_i32_13 : i32
    scf.if %22 {
      %c0_14 = arith.constant 0 : index
      %c0_15 = arith.constant 0 : index
      %23 = vector.load %arg6[%c0_14, %c0_15] : memref<16x32xf32, #tpu.memory_space<vmem>>, vector<16x32xf32>
      %c0_16 = arith.constant 0 : index
      %c0_17 = arith.constant 0 : index
      %24 = vector.load %arg5[%c0_16, %c0_17] : memref<16x32xf32, #tpu.memory_space<vmem>>, vector<16x32xf32>
      tpu.vector_store %arg5[%c0_16, %c0_17], %23 {strides = array<i32>} : memref<16x32xf32, #tpu.memory_space<vmem>>, vector<16x32xf32>,
    } else {
    }
    return
  }
  func.func @transform_0(%arg0: i32, %arg1: i32) -> (i32, i32) {
    %c0_i32 = arith.constant 0 : i32
    %c0_i32_0 = arith.constant 0 : i32
    return %arg0, %c0_i32 : i32, i32
  }
  func.func @transform_1(%arg0: i32, %arg1: i32) -> (i32, i32) {
    %c0_i32 = arith.constant 0 : i32
    %c0_i32_0 = arith.constant 0 : i32
    return %arg1, %c0_i32 : i32, i32
  }
  func.func @transform_2(%arg0: i32, %arg1: i32) -> (i32, i32) {
    %c0_i32 = arith.constant 0 : i32
    %c0_i32_0 = arith.constant 0 : i32
    return %arg1, %c0_i32 : i32, i32
  }
  func.func @transform_3(%arg0: i32, %arg1: i32) -> (i32, i32) {
    %c0_i32 = arith.constant 0 : i32
    %c0_i32_0 = arith.constant 0 : i32
    return %arg0, %c0_i32 : i32, i32
  }
}

</mosaic_0001>

<llo_original>
// kernel: tpu_custom_call.1
$region0: #{tpu_custom_call.1}
  #allocation0 [shape = 'u32[]', space=smem, size = 0x4, offset = 0x4, fixed_abs, tag = 'smem constant byte address 0x4 - core index']
  #allocation1 [shape = 'u32[144,128]{1,0:T(1,128)}', space=vmem, size = 0x12000, scoped, tag = 'internal scratch']
  #allocation2 [shape = 'f32[16,32]{1,0:T(8,128)}', space=vmem, size = 0x2000, scoped, tag = 'scratch operand']
  %s0 = inlined_call_operand.vmem [shape: f32[16,32], index: 0, kind: input, shape index: {}]
  %s1 = inlined_call_operand.vmem [shape: f32[512,32], index: 1, kind: input, shape index: {}]
  %s2 = inlined_call_operand.vmem [shape: f32[256,32], index: 2, kind: input, shape index: {}]
  %s3 = inlined_call_operand.hbm [shape: f32[16,32], index: 3, kind: output, shape index: {}]
  %s4 = sld [smem:[#allocation0]]
  $region30: #{tpu_custom_call.1} parent=0
    _
  %s6 = ssub.s32 1, %s4
  %s7 = scalar_select 0, %s6, %s4
  $region1: #{tpu_custom_call.1} parent=0
    #allocation3 [shape = 'u8[8192]{0}', space=vmem, size = 0x2000, scoped, tag = 'output window, operand 0, single buffered']
    #allocation4 [shape = 's32[1]{0}', space=sflag, size = 0x4, scoped, tag = 'scoped memory for tpu_custom_call.1']
    %8 = vsyncpa [#allocation4], 0
    // Predicated region
    $region2: #{tpu_custom_call.1} parent=1 // pred_check
      _
    $region3: #{tpu_custom_call.1} parent=1 // pred_check_branch
      %10 = sbr.rel (0) target = $region5
    $region4: #{tpu_custom_call.1} parent=1 // pred_region
      _
    $region5: #{tpu_custom_call.1} parent=1 // pred_fallthru
      _
    // Predicated region
    $region6: #{tpu_custom_call.1} parent=1 // pred_check
      _
    $region7: #{tpu_custom_call.1} parent=1 // pred_check_branch
      %12 = sbr.rel (0) target = $region9
    $region8: #{tpu_custom_call.1} parent=1 // pred_region
      _
    $region9: #{tpu_custom_call.1} parent=1 // pred_fallthru
      _
    // Predicated region
    $region10: #{tpu_custom_call.1} parent=1 // pred_check
      _
    $region11: #{tpu_custom_call.1} parent=1 // pred_check_branch
      %14 = sbr.rel (0) target = $region13
    $region12: #{tpu_custom_call.1} parent=1 // pred_region
      _
    $region13: #{tpu_custom_call.1} parent=1 // pred_fallthru
      _
    %p15 = scmp.eq.s32.totalorder 0, 0
    // Predicated region
    $region14: #{tpu_custom_call.1} parent=1 // pred_check
      %p16 = pneg %p15
    $region15: #{tpu_custom_call.1} parent=1 // pred_check_branch
      %18 = sbr.rel (%p16) target = $region17
    $region16: #{tpu_custom_call.1} parent=1 // pred_region
      %vm19 = vcmask 261120
      %20 = vst.msk [vmem:[#allocation2] sm:$0xff] %vm19, 0.0
      %21 = vst.msk [vmem:[#allocation2 + $0x8] sm:$0xff] %vm19, 0.0
    $region17: #{tpu_custom_call.1} parent=1 // pred_fallthru
      _
    %v22 = vld [vmem:[%s0] sm:$0xff]
    %v23 = vld [vmem:[%s0 + $0x8] sm:$0xff]
    %v24 = vld [vmem:[%s1] sm:$0xff]
    %v25 = vld [vmem:[%s1 + $0x8] sm:$0xff]
    %v26 = vld [vmem:[%s1 + $0x10] sm:$0xff]
    %v27 = vld [vmem:[%s1 + $0x18] sm:$0xff]
    %v28 = vld [vmem:[%s1 + $0x20] sm:$0xff]
    %v29 = vld [vmem:[%s1 + $0x28] sm:$0xff]
    %v30 = vld [vmem:[%s1 + $0x30] sm:$0xff]
    %v31 = vld [vmem:[%s1 + $0x38] sm:$0xff]
    %v32 = vld [vmem:[%s1 + $0x40] sm:$0xff]
    %v33 = vld [vmem:[%s1 + $0x48] sm:$0xff]
    %v34 = vld [vmem:[%s1 + $0x50] sm:$0xff]
    %v35 = vld [vmem:[%s1 + $0x58] sm:$0xff]
    %v36 = vld [vmem:[%s1 + $0x60] sm:$0xff]
    %v37 = vld [vmem:[%s1 + $0x68] sm:$0xff]
    %v38 = vld [vmem:[%s1 + $0x70] sm:$0xff]
    %v39 = vld [vmem:[%s1 + $0x78] sm:$0xff]
    %v40 = vld [vmem:[%s1 + $0x80] sm:$0xff]
    %v41 = vld [vmem:[%s1 + $0x88] sm:$0xff]
    %v42 = vld [vmem:[%s1 + $0x90] sm:$0xff]
    %v43 = vld [vmem:[%s1 + $0x98] sm:$0xff]
    %v44 = vld [vmem:[%s1 + $0xa0] sm:$0xff]
    %v45 = vld [vmem:[%s1 + $0xa8] sm:$0xff]
    %v46 = vld [vmem:[%s1 + $0xb0] sm:$0xff]
    %v47 = vld [vmem:[%s1 + $0xb8] sm:$0xff]
    %v48 = vld [vmem:[%s1 + $0xc0] sm:$0xff]
    %v49 = vld [vmem:[%s1 + $0xc8] sm:$0xff]
    %v50 = vld [vmem:[%s1 + $0xd0] sm:$0xff]
    %v51 = vld [vmem:[%s1 + $0xd8] sm:$0xff]
    %v52 = vld [vmem:[%s1 + $0xe0] sm:$0xff]
    %v53 = vld [vmem:[%s1 + $0xe8] sm:$0xff]
    %v54 = vld [vmem:[%s1 + $0xf0] sm:$0xff]
    %v55 = vld [vmem:[%s1 + $0xf8] sm:$0xff]
    %v56 = vld [vmem:[%s1 + $0x100] sm:$0xff]
    %v57 = vld [vmem:[%s1 + $0x108] sm:$0xff]
    %v58 = vld [vmem:[%s1 + $0x110] sm:$0xff]
    %v59 = vld [vmem:[%s1 + $0x118] sm:$0xff]
    %v60 = vld [vmem:[%s1 + $0x120] sm:$0xff]
    %v61 = vld [vmem:[%s1 + $0x128] sm:$0xff]
    %v62 = vld [vmem:[%s1 + $0x130] sm:$0xff]
    %v63 = vld [vmem:[%s1 + $0x138] sm:$0xff]
    %v64 = vld [vmem:[%s1 + $0x140] sm:$0xff]
    %v65 = vld [vmem:[%s1 + $0x148] sm:$0xff]
    %v66 = vld [vmem:[%s1 + $0x150] sm:$0xff]
    %v67 = vld [vmem:[%s1 + $0x158] sm:$0xff]
    %v68 = vld [vmem:[%s1 + $0x160] sm:$0xff]
    %v69 = vld [vmem:[%s1 + $0x168] sm:$0xff]
    %v70 = vld [vmem:[%s1 + $0x170] sm:$0xff]
    %v71 = vld [vmem:[%s1 + $0x178] sm:$0xff]
    %v72 = vld [vmem:[%s1 + $0x180] sm:$0xff]
    %v73 = vld [vmem:[%s1 + $0x188] sm:$0xff]
    %v74 = vld [vmem:[%s1 + $0x190] sm:$0xff]
    %v75 = vld [vmem:[%s1 + $0x198] sm:$0xff]
    %v76 = vld [vmem:[%s1 + $0x1a0] sm:$0xff]
    %v77 = vld [vmem:[%s1 + $0x1a8] sm:$0xff]
    %v78 = vld [vmem:[%s1 + $0x1b0] sm:$0xff]
    %v79 = vld [vmem:[%s1 + $0x1b8] sm:$0xff]
    %v80 = vld [vmem:[%s1 + $0x1c0] sm:$0xff]
    %v81 = vld [vmem:[%s1 + $0x1c8] sm:$0xff]
    %v82 = vld [vmem:[%s1 + $0x1d0] sm:$0xff]
    %v83 = vld [vmem:[%s1 + $0x1d8] sm:$0xff]
    %v84 = vld [vmem:[%s1 + $0x1e0] sm:$0xff]
    %v85 = vld [vmem:[%s1 + $0x1e8] sm:$0xff]
    %v86 = vld [vmem:[%s1 + $0x1f0] sm:$0xff]
    %v87 = vld [vmem:[%s1 + $0x1f8] sm:$0xff]
    %vm88 = vcmask 261120
    %v90 = vsel %vm88, %v22, 0
    %v93 = vsel %vm88, %v23, 0
    %v96 = vsel %vm88, %v24, 0
    %v99 = vsel %vm88, %v25, 0
    %v102 = vsel %vm88, %v26, 0
    %v105 = vsel %vm88, %v27, 0
    %v108 = vsel %vm88, %v28, 0
    %v111 = vsel %vm88, %v29, 0
    %v114 = vsel %vm88, %v30, 0
    %v117 = vsel %vm88, %v31, 0
    %v120 = vsel %vm88, %v32, 0
    %v123 = vsel %vm88, %v33, 0
    %v126 = vsel %vm88, %v34, 0
    %v129 = vsel %vm88, %v35, 0
    %v132 = vsel %vm88, %v36, 0
    %v135 = vsel %vm88, %v37, 0
    %v138 = vsel %vm88, %v38, 0
    %v141 = vsel %vm88, %v39, 0
    %v144 = vsel %vm88, %v40, 0
    %v147 = vsel %vm88, %v41, 0
    %v150 = vsel %vm88, %v42, 0
    %v153 = vsel %vm88, %v43, 0
    %v156 = vsel %vm88, %v44, 0
    %v159 = vsel %vm88, %v45, 0
    %v162 = vsel %vm88, %v46, 0
    %v165 = vsel %vm88, %v47, 0
    %v168 = vsel %vm88, %v48, 0
    %v171 = vsel %vm88, %v49, 0
    %v174 = vsel %vm88, %v50, 0
    %v177 = vsel %vm88, %v51, 0
    %v180 = vsel %vm88, %v52, 0
    %v183 = vsel %vm88, %v53, 0
    %v186 = vsel %vm88, %v54, 0
    %v189 = vsel %vm88, %v55, 0
    %v192 = vsel %vm88, %v56, 0
    %v195 = vsel %vm88, %v57, 0
    %v198 = vsel %vm88, %v58, 0
    %v201 = vsel %vm88, %v59, 0
    %v204 = vsel %vm88, %v60, 0
    %v207 = vsel %vm88, %v61, 0
    %v210 = vsel %vm88, %v62, 0
    %v213 = vsel %vm88, %v63, 0
    %v216 = vsel %vm88, %v64, 0
    %v219 = vsel %vm88, %v65, 0
    %v222 = vsel %vm88, %v66, 0
    %v225 = vsel %vm88, %v67, 0
    %v228 = vsel %vm88, %v68, 0
    %v231 = vsel %vm88, %v69, 0
    %v234 = vsel %vm88, %v70, 0
    %v237 = vsel %vm88, %v71, 0
    %v240 = vsel %vm88, %v72, 0
    %v243 = vsel %vm88, %v73, 0
    %v246 = vsel %vm88, %v74, 0
    %v249 = vsel %vm88, %v75, 0
    %v252 = vsel %vm88, %v76, 0
    %v255 = vsel %vm88, %v77, 0
    %v258 = vsel %vm88, %v78, 0
    %v261 = vsel %vm88, %v79, 0
    %v264 = vsel %vm88, %v80, 0
    %v267 = vsel %vm88, %v81, 0
    %v270 = vsel %vm88, %v82, 0
    %v273 = vsel %vm88, %v83, 0
    %v276 = vsel %vm88, %v84, 0
    %v279 = vsel %vm88, %v85, 0
    %v282 = vsel %vm88, %v86, 0
    %v285 = vsel %vm88, %v87, 0
    %287 = vmatprep.subr.mxu0 0.0
    %288 = vmatpush1.xpose.msra.mxu0 %v141
    %289 = vmatprep.subr.mxu0 0.0
    %290 = vmatpush1.xpose.msra.mxu0 %v138
    %291 = vmatprep.subr.mxu0 0.0
    %292 = vmatpush1.xpose.msra.mxu0 %v135
    %293 = vmatprep.subr.mxu0 0.0
    %294 = vmatpush1.xpose.msra.mxu0 %v132
    %295 = vmatprep.subr.mxu0 0.0
    %296 = vmatpush1.xpose.msra.mxu0 %v129
    %297 = vmatprep.subr.mxu0 0.0
    %298 = vmatpush1.xpose.msra.mxu0 %v126
    %299 = vmatprep.subr.mxu0 0.0
    %300 = vmatpush1.xpose.msra.mxu0 %v123
    %301 = vmatprep.subr.mxu0 0.0
    %302 = vmatpush1.xpose.msra.mxu0 %v120
    %303 = vmatprep.subr.mxu0 0.0
    %304 = vmatpush1.xpose.msra.mxu0 %v117
    %305 = vmatprep.subr.mxu0 0.0
    %306 = vmatpush1.xpose.msra.mxu0 %v114
    %307 = vmatprep.subr.mxu0 0.0
    %308 = vmatpush1.xpose.msra.mxu0 %v111
    %309 = vmatprep.subr.mxu0 0.0
    %310 = vmatpush1.xpose.msra.mxu0 %v108
    %311 = vmatprep.subr.mxu0 0.0
    %312 = vmatpush1.xpose.msra.mxu0 %v105
    %313 = vmatprep.subr.mxu0 0.0
    %314 = vmatpush1.xpose.msra.mxu0 %v102
    %315 = vmatprep.subr.mxu0 0.0
    %316 = vmatpush1.xpose.msra.mxu0 %v99
    %317 = vmatprep.subr.mxu0 0.0
    %318 = vmatpush1.xpose.msra.mxu0 %v96
    %319 = vmatprep.subr.mxu0 0.0
    %320 = vmatpush2.xpose.msra.mxu0 %v189
    %321 = vmatprep.subr.mxu0 0.0
    %322 = vmatpush2.xpose.msra.mxu0 %v186
    %323 = vmatprep.subr.mxu0 0.0
    %324 = vmatpush2.xpose.msra.mxu0 %v183
    %325 = vmatprep.subr.mxu0 0.0
    %326 = vmatpush2.xpose.msra.mxu0 %v180
    %327 = vmatprep.subr.mxu0 0.0
    %328 = vmatpush2.xpose.msra.mxu0 %v177
    %329 = vmatprep.subr.mxu0 0.0
    %330 = vmatpush2.xpose.msra.mxu0 %v174
    %331 = vmatprep.subr.mxu0 0.0
    %332 = vmatpush2.xpose.msra.mxu0 %v171
    %333 = vmatprep.subr.mxu0 0.0
    %334 = vmatpush2.xpose.msra.mxu0 %v168
    %335 = vmatprep.subr.mxu0 0.0
    %336 = vmatpush2.xpose.msra.mxu0 %v165
    %337 = vmatprep.subr.mxu0 0.0
    %338 = vmatpush2.xpose.msra.mxu0 %v162
    %339 = vmatprep.subr.mxu0 0.0
    %340 = vmatpush2.xpose.msra.mxu0 %v159
    %341 = vmatprep.subr.mxu0 0.0
    %342 = vmatpush2.xpose.msra.mxu0 %v156
    %343 = vmatprep.subr.mxu0 0.0
    %344 = vmatpush2.xpose.msra.mxu0 %v153
    %345 = vmatprep.subr.mxu0 0.0
    %346 = vmatpush2.xpose.msra.mxu0 %v150
    %347 = vmatprep.subr.mxu0 0.0
    %348 = vmatpush2.xpose.msra.mxu0 %v147
    %349 = vmatprep.subr.mxu0 0.0
    %350 = vmatpush2.xpose.msra.mxu0 %v144
    %351 = vmatprep.mubr.f32.mxu0 0.0
    %352 = vmatmul.mubr.f32.gmra.mxu0 %v90
    %v353 = vpop.f32.mrf.mxu0
    %v354 = vadd.f32 0.0, %v353
    %v355 = vpop.f32.mrf.mxu0
    %v356 = vadd.f32 0.0, %v355
    %357 = vmatprep.mubr.f32.mxu0 0.0
    %358 = vmatmul.mubr.f32.gmra.mxu0 %v93
    %v359 = vpop.f32.mrf.mxu0
    %v360 = vadd.f32 0.0, %v359
    %v361 = vpop.f32.mrf.mxu0
    %v362 = vadd.f32 0.0, %v361
    %363 = vdwg.mxu0
    %364 = vmatprep.subr.mxu0 0.0
    %365 = vmatpush1.xpose.msra.mxu0 %v237
    %366 = vmatprep.subr.mxu0 0.0
    %367 = vmatpush1.xpose.msra.mxu0 %v234
    %368 = vmatprep.subr.mxu0 0.0
    %369 = vmatpush1.xpose.msra.mxu0 %v231
    %370 = vmatprep.subr.mxu0 0.0
    %371 = vmatpush1.xpose.msra.mxu0 %v228
    %372 = vmatprep.subr.mxu0 0.0
    %373 = vmatpush1.xpose.msra.mxu0 %v225
    %374 = vmatprep.subr.mxu0 0.0
    %375 = vmatpush1.xpose.msra.mxu0 %v222
    %376 = vmatprep.subr.mxu0 0.0
    %377 = vmatpush1.xpose.msra.mxu0 %v219
    %378 = vmatprep.subr.mxu0 0.0
    %379 = vmatpush1.xpose.msra.mxu0 %v216
    %380 = vmatprep.subr.mxu0 0.0
    %381 = vmatpush1.xpose.msra.mxu0 %v213
    %382 = vmatprep.subr.mxu0 0.0
    %383 = vmatpush1.xpose.msra.mxu0 %v210
    %384 = vmatprep.subr.mxu0 0.0
    %385 = vmatpush1.xpose.msra.mxu0 %v207
    %386 = vmatprep.subr.mxu0 0.0
    %387 = vmatpush1.xpose.msra.mxu0 %v204
    %388 = vmatprep.subr.mxu0 0.0
    %389 = vmatpush1.xpose.msra.mxu0 %v201
    %390 = vmatprep.subr.mxu0 0.0
    %391 = vmatpush1.xpose.msra.mxu0 %v198
    %392 = vmatprep.subr.mxu0 0.0
    %393 = vmatpush1.xpose.msra.mxu0 %v195
    %394 = vmatprep.subr.mxu0 0.0
    %395 = vmatpush1.xpose.msra.mxu0 %v192
    %396 = vmatprep.subr.mxu0 0.0
    %397 = vmatpush2.xpose.msra.mxu0 %v285
    %398 = vmatprep.subr.mxu0 0.0
    %399 = vmatpush2.xpose.msra.mxu0 %v282
    %400 = vmatprep.subr.mxu0 0.0
    %401 = vmatpush2.xpose.msra.mxu0 %v279
    %402 = vmatprep.subr.mxu0 0.0
    %403 = vmatpush2.xpose.msra.mxu0 %v276
    %404 = vmatprep.subr.mxu0 0.0
    %405 = vmatpush2.xpose.msra.mxu0 %v273
    %406 = vmatprep.subr.mxu0 0.0
    %407 = vmatpush2.xpose.msra.mxu0 %v270
    %408 = vmatprep.subr.mxu0 0.0
    %409 = vmatpush2.xpose.msra.mxu0 %v267
    %410 = vmatprep.subr.mxu0 0.0
    %411 = vmatpush2.xpose.msra.mxu0 %v264
    %412 = vmatprep.subr.mxu0 0.0
    %413 = vmatpush2.xpose.msra.mxu0 %v261
    %414 = vmatprep.subr.mxu0 0.0
    %415 = vmatpush2.xpose.msra.mxu0 %v258
    %416 = vmatprep.subr.mxu0 0.0
    %417 = vmatpush2.xpose.msra.mxu0 %v255
    %418 = vmatprep.subr.mxu0 0.0
    %419 = vmatpush2.xpose.msra.mxu0 %v252
    %420 = vmatprep.subr.mxu0 0.0
    %421 = vmatpush2.xpose.msra.mxu0 %v249
    %422 = vmatprep.subr.mxu0 0.0
    %423 = vmatpush2.xpose.msra.mxu0 %v246
    %424 = vmatprep.subr.mxu0 0.0
    %425 = vmatpush2.xpose.msra.mxu0 %v243
    %426 = vmatprep.subr.mxu0 0.0
    %427 = vmatpush2.xpose.msra.mxu0 %v240
    %428 = vmatprep.mubr.f32.mxu0 0.0
    %429 = vmatmul.mubr.f32.gmra.mxu0 %v90
    %v430 = vpop.f32.mrf.mxu0
    %v431 = vadd.f32 0.0, %v430
    %v432 = vpop.f32.mrf.mxu0
    %v433 = vadd.f32 0.0, %v432
    %434 = vmatprep.mubr.f32.mxu0 0.0
    %435 = vmatmul.mubr.f32.gmra.mxu0 %v93
    %v436 = vpop.f32.mrf.mxu0
    %v437 = vadd.f32 0.0, %v436
    %v438 = vpop.f32.mrf.mxu0
    %v439 = vadd.f32 0.0, %v438
    %440 = vdwg.mxu0
    %v441 = vxor.u32 %v354, 2147483648
    %v442 = vxor.u32 %v356, 2147483648
    %v443 = vxor.u32 %v360, 2147483648
    %v444 = vxor.u32 %v362, 2147483648
    %v445 = vmul.f32 %v441, 1.442695
    %v446 = vpow.pop %v445
    %v447 = vmul.f32 %v442, 1.442695
    %v448 = vpow.pop %v447
    %v449 = vmul.f32 %v443, 1.442695
    %v450 = vpow.pop %v449
    %v451 = vmul.f32 %v444, 1.442695
    %v452 = vpow.pop %v451
    %v453 = vadd.f32 %v446, 1.0
    %v454 = vadd.f32 %v448, 1.0
    %v455 = vadd.f32 %v450, 1.0
    %v456 = vadd.f32 %v452, 1.0
    %v457 = vrcp.pop %v453
    %v458 = vmul.f32 1.0, %v457
    %v459 = vrcp.pop %v454
    %v460 = vmul.f32 1.0, %v459
    %v461 = vrcp.pop %v455
    %v462 = vmul.f32 1.0, %v461
    %v463 = vrcp.pop %v456
    %v464 = vmul.f32 1.0, %v463
    %v465 = vmul.f32 %v354, %v458
    %v466 = vmul.f32 %v356, %v460
    %v467 = vmul.f32 %v360, %v462
    %v468 = vmul.f32 %v362, %v464
    %v469 = vmul.f32 %v465, %v431
    %v470 = vmul.f32 %v466, %v433
    %v471 = vmul.f32 %v467, %v437
    %v472 = vmul.f32 %v468, %v439
    %v473 = vld [vmem:[#allocation2] sm:$0xff]
    %v474 = vld [vmem:[#allocation2 + $0x8] sm:$0xff]
    %v475 = vld [vmem:[%s2] sm:$0xff]
    %v476 = vld [vmem:[%s2 + $0x8] sm:$0xff]
    %v477 = vld [vmem:[%s2 + $0x10] sm:$0xff]
    %v478 = vld [vmem:[%s2 + $0x18] sm:$0xff]
    %v479 = vld [vmem:[%s2 + $0x20] sm:$0xff]
    %v480 = vld [vmem:[%s2 + $0x28] sm:$0xff]
    %v481 = vld [vmem:[%s2 + $0x30] sm:$0xff]
    %v482 = vld [vmem:[%s2 + $0x38] sm:$0xff]
    %v483 = vld [vmem:[%s2 + $0x40] sm:$0xff]
    %v484 = vld [vmem:[%s2 + $0x48] sm:$0xff]
    %v485 = vld [vmem:[%s2 + $0x50] sm:$0xff]
    %v486 = vld [vmem:[%s2 + $0x58] sm:$0xff]
    %v487 = vld [vmem:[%s2 + $0x60] sm:$0xff]
    %v488 = vld [vmem:[%s2 + $0x68] sm:$0xff]
    %v489 = vld [vmem:[%s2 + $0x70] sm:$0xff]
    %v490 = vld [vmem:[%s2 + $0x78] sm:$0xff]
    %v491 = vld [vmem:[%s2 + $0x80] sm:$0xff]
    %v492 = vld [vmem:[%s2 + $0x88] sm:$0xff]
    %v493 = vld [vmem:[%s2 + $0x90] sm:$0xff]
    %v494 = vld [vmem:[%s2 + $0x98] sm:$0xff]
    %v495 = vld [vmem:[%s2 + $0xa0] sm:$0xff]
    %v496 = vld [vmem:[%s2 + $0xa8] sm:$0xff]
    %v497 = vld [vmem:[%s2 + $0xb0] sm:$0xff]
    %v498 = vld [vmem:[%s2 + $0xb8] sm:$0xff]
    %v499 = vld [vmem:[%s2 + $0xc0] sm:$0xff]
    %v500 = vld [vmem:[%s2 + $0xc8] sm:$0xff]
    %v501 = vld [vmem:[%s2 + $0xd0] sm:$0xff]
    %v502 = vld [vmem:[%s2 + $0xd8] sm:$0xff]
    %v503 = vld [vmem:[%s2 + $0xe0] sm:$0xff]
    %v504 = vld [vmem:[%s2 + $0xe8] sm:$0xff]
    %v505 = vld [vmem:[%s2 + $0xf0] sm:$0xff]
    %v506 = vld [vmem:[%s2 + $0xf8] sm:$0xff]
    %507 = vmatprep.subr.mxu0 0.0
    %508 = vmatpush1.msra.mxu0 %v490
    %509 = vmatprep.subr.mxu0 0.0
    %510 = vmatpush1.msra.mxu0 %v489
    %511 = vmatprep.subr.mxu0 0.0
    %512 = vmatpush1.msra.mxu0 %v488
    %513 = vmatprep.subr.mxu0 0.0
    %514 = vmatpush1.msra.mxu0 %v487
    %515 = vmatprep.subr.mxu0 0.0
    %516 = vmatpush1.msra.mxu0 %v486
    %517 = vmatprep.subr.mxu0 0.0
    %518 = vmatpush1.msra.mxu0 %v485
    %519 = vmatprep.subr.mxu0 0.0
    %520 = vmatpush1.msra.mxu0 %v484
    %521 = vmatprep.subr.mxu0 0.0
    %522 = vmatpush1.msra.mxu0 %v483
    %523 = vmatprep.subr.mxu0 0.0
    %524 = vmatpush1.msra.mxu0 %v482
    %525 = vmatprep.subr.mxu0 0.0
    %526 = vmatpush1.msra.mxu0 %v481
    %527 = vmatprep.subr.mxu0 0.0
    %528 = vmatpush1.msra.mxu0 %v480
    %529 = vmatprep.subr.mxu0 0.0
    %530 = vmatpush1.msra.mxu0 %v479
    %531 = vmatprep.subr.mxu0 0.0
    %532 = vmatpush1.msra.mxu0 %v478
    %533 = vmatprep.subr.mxu0 0.0
    %534 = vmatpush1.msra.mxu0 %v477
    %535 = vmatprep.subr.mxu0 0.0
    %536 = vmatpush1.msra.mxu0 %v476
    %537 = vmatprep.subr.mxu0 0.0
    %538 = vmatpush1.msra.mxu0 %v475
    %539 = vmatprep.subr.mxu0 0.0
    %540 = vmatpush2.msra.mxu0 %v506
    %541 = vmatprep.subr.mxu0 0.0
    %542 = vmatpush2.msra.mxu0 %v505
    %543 = vmatprep.subr.mxu0 0.0
    %544 = vmatpush2.msra.mxu0 %v504
    %545 = vmatprep.subr.mxu0 0.0
    %546 = vmatpush2.msra.mxu0 %v503
    %547 = vmatprep.subr.mxu0 0.0
    %548 = vmatpush2.msra.mxu0 %v502
    %549 = vmatprep.subr.mxu0 0.0
    %550 = vmatpush2.msra.mxu0 %v501
    %551 = vmatprep.subr.mxu0 0.0
    %552 = vmatpush2.msra.mxu0 %v500
    %553 = vmatprep.subr.mxu0 0.0
    %554 = vmatpush2.msra.mxu0 %v499
    %555 = vmatprep.subr.mxu0 0.0
    %556 = vmatpush2.msra.mxu0 %v498
    %557 = vmatprep.subr.mxu0 0.0
    %558 = vmatpush2.msra.mxu0 %v497
    %559 = vmatprep.subr.mxu0 0.0
    %560 = vmatpush2.msra.mxu0 %v496
    %561 = vmatprep.subr.mxu0 0.0
    %562 = vmatpush2.msra.mxu0 %v495
    %563 = vmatprep.subr.mxu0 0.0
    %564 = vmatpush2.msra.mxu0 %v494
    %565 = vmatprep.subr.mxu0 0.0
    %566 = vmatpush2.msra.mxu0 %v493
    %567 = vmatprep.subr.mxu0 0.0
    %568 = vmatpush2.msra.mxu0 %v492
    %569 = vmatprep.subr.mxu0 0.0
    %570 = vmatpush2.msra.mxu0 %v491
    %571 = vmatprep.mubr.f32.mxu0 %v470
    %572 = vmatmul.mubr.f32.gmra.mxu0 %v469
    %v573 = vpop.f32.mrf.mxu0
    %v574 = vadd.f32 0.0, %v573
    %v575 = vpop.f32.mrf.mxu0
    %576 = vmatprep.mubr.f32.mxu0 %v472
    %577 = vmatmul.mubr.f32.gmra.mxu0 %v471
    %v578 = vpop.f32.mrf.mxu0
    %v579 = vadd.f32 0.0, %v578
    %v580 = vpop.f32.mrf.mxu0
    %581 = vdwg.mxu0
    %v582 = vadd.f32 %v473, %v574
    %v583 = vadd.f32 %v474, %v579
    %584 = vst.msk [vmem:[#allocation2] sm:$0xff] %vm88, %v582
    %585 = vst.msk [vmem:[#allocation2 + $0x8] sm:$0xff] %vm88, %v583
    // Predicated region
    $region18: #{tpu_custom_call.1} parent=1 // pred_check
      %p586 = pneg %p15
    $region19: #{tpu_custom_call.1} parent=1 // pred_check_branch
      %588 = sbr.rel (%p586) target = $region21
    $region20: #{tpu_custom_call.1} parent=1 // pred_region
      %v589 = vld [vmem:[#allocation2] sm:$0xff]
      %v590 = vld [vmem:[#allocation2 + $0x8] sm:$0xff]
      %591 = vst.msk [vmem:[#allocation3] sm:$0xff] %vm88, %v589
      %592 = vst.msk [vmem:[#allocation3 + $0x8] sm:$0xff] %vm88, %v590
    $region21: #{tpu_custom_call.1} parent=1 // pred_fallthru
      _
    // Predicated region
    $region22: #{tpu_custom_call.1} parent=1 // pred_check
      _
    $region23: #{tpu_custom_call.1} parent=1 // pred_check_branch
      %594 = sbr.rel (0) target = $region25
    $region24: #{tpu_custom_call.1} parent=1 // pred_region
      %s596 = ssub.s32 256, 256
      %597 = vsyncadd [#allocation4], %s596
      %s598 = sshll.u32 [#allocation3], 4
      %s599 = int_to_ptr.vmem [resolvable:$true] %s598
      %604 = dma.vmem_to_hbm [thread:$0]  %s599, 256, %s3, [#allocation4], 128, 128, 8
    $region25: #{tpu_custom_call.1} parent=1 // pred_fallthru
      _
    // Predicated region
    $region26: #{tpu_custom_call.1} parent=1 // pred_check
      _
    $region27: #{tpu_custom_call.1} parent=1 // pred_check_branch
      %606 = sbr.rel (0) target = $region29
    $region28: #{tpu_custom_call.1} parent=1 // pred_region
      %607 = dma.done [#allocation4], 256
    $region29: #{tpu_custom_call.1} parent=1 // pred_fallthru
      _
    %608 = vsyncpa [#allocation4], 1

// kernel: tpu_custom_call.1
$region0: #{tpu_custom_call.1}
  #allocation0 [shape = 'u32[]', space=smem, size = 0x4, offset = 0x4, fixed_abs, tag = 'smem constant byte address 0x4 - core index']
  #allocation1 [shape = 'u32[144,128]{1,0:T(1,128)}', space=vmem, size = 0x12000, scoped, tag = 'internal scratch']
  #allocation2 [shape = 'f32[16,32]{1,0:T(8,128)}', space=vmem, size = 0x2000, scoped, tag = 'scratch operand']
  %s0 = inlined_call_operand.vmem [shape: f32[16,32], index: 0, kind: input, shape index: {}]
  %s1 = inlined_call_operand.vmem [shape: f32[512,32], index: 1, kind: input, shape index: {}]
  %s2 = inlined_call_operand.vmem [shape: f32[256,32], index: 2, kind: input, shape index: {}]
  %s3 = inlined_call_operand.hbm [shape: f32[16,32], index: 3, kind: output, shape index: {}]
  %s4 = sld [smem:[#allocation0]]
  $region30: #{tpu_custom_call.1} parent=0
    _
  %s6 = ssub.s32 1, %s4
  %s7 = scalar_select 0, %s6, %s4
  $region1: #{tpu_custom_call.1} parent=0
    #allocation3 [shape = 'u8[8192]{0}', space=vmem, size = 0x2000, scoped, tag = 'output window, operand 0, single buffered']
    #allocation4 [shape = 's32[1]{0}', space=sflag, size = 0x4, scoped, tag = 'scoped memory for tpu_custom_call.1']
    %8 = vsyncpa [#allocation4], 0
    // Predicated region
    $region2: #{tpu_custom_call.1} parent=1 // pred_check
      _
    $region3: #{tpu_custom_call.1} parent=1 // pred_check_branch
      %10 = sbr.rel (0) target = $region5
    $region4: #{tpu_custom_call.1} parent=1 // pred_region
      _
    $region5: #{tpu_custom_call.1} parent=1 // pred_fallthru
      _
    // Predicated region
    $region6: #{tpu_custom_call.1} parent=1 // pred_check
      _
    $region7: #{tpu_custom_call.1} parent=1 // pred_check_branch
      %12 = sbr.rel (0) target = $region9
    $region8: #{tpu_custom_call.1} parent=1 // pred_region
      _
    $region9: #{tpu_custom_call.1} parent=1 // pred_fallthru
      _
    // Predicated region
    $region10: #{tpu_custom_call.1} parent=1 // pred_check
      _
    $region11: #{tpu_custom_call.1} parent=1 // pred_check_branch
      %14 = sbr.rel (0) target = $region13
    $region12: #{tpu_custom_call.1} parent=1 // pred_region
      _
    $region13: #{tpu_custom_call.1} parent=1 // pred_fallthru
      _
    %p15 = scmp.eq.s32.totalorder 0, 0
    // Predicated region
    $region14: #{tpu_custom_call.1} parent=1 // pred_check
      %p16 = pneg %p15
    $region15: #{tpu_custom_call.1} parent=1 // pred_check_branch
      %18 = sbr.rel (%p16) target = $region17
    $region16: #{tpu_custom_call.1} parent=1 // pred_region
      %vm19 = vcmask 261120
      %20 = vst.msk [vmem:[#allocation2] sm:$0xff] %vm19, 0.0
      %21 = vst.msk [vmem:[#allocation2 + $0x8] sm:$0xff] %vm19, 0.0
    $region17: #{tpu_custom_call.1} parent=1 // pred_fallthru
      _
    %v22 = vld [vmem:[%s0] sm:$0xff]
    %v23 = vld [vmem:[%s0 + $0x8] sm:$0xff]
    %v24 = vld [vmem:[%s1] sm:$0xff]
    %v25 = vld [vmem:[%s1 + $0x8] sm:$0xff]
    %v26 = vld [vmem:[%s1 + $0x10] sm:$0xff]
    %v27 = vld [vmem:[%s1 + $0x18] sm:$0xff]
    %v28 = vld [vmem:[%s1 + $0x20] sm:$0xff]
    %v29 = vld [vmem:[%s1 + $0x28] sm:$0xff]
    %v30 = vld [vmem:[%s1 + $0x30] sm:$0xff]
    %v31 = vld [vmem:[%s1 + $0x38] sm:$0xff]
    %v32 = vld [vmem:[%s1 + $0x40] sm:$0xff]
    %v33 = vld [vmem:[%s1 + $0x48] sm:$0xff]
    %v34 = vld [vmem:[%s1 + $0x50] sm:$0xff]
    %v35 = vld [vmem:[%s1 + $0x58] sm:$0xff]
    %v36 = vld [vmem:[%s1 + $0x60] sm:$0xff]
    %v37 = vld [vmem:[%s1 + $0x68] sm:$0xff]
    %v38 = vld [vmem:[%s1 + $0x70] sm:$0xff]
    %v39 = vld [vmem:[%s1 + $0x78] sm:$0xff]
    %v40 = vld [vmem:[%s1 + $0x80] sm:$0xff]
    %v41 = vld [vmem:[%s1 + $0x88] sm:$0xff]
    %v42 = vld [vmem:[%s1 + $0x90] sm:$0xff]
    %v43 = vld [vmem:[%s1 + $0x98] sm:$0xff]
    %v44 = vld [vmem:[%s1 + $0xa0] sm:$0xff]
    %v45 = vld [vmem:[%s1 + $0xa8] sm:$0xff]
    %v46 = vld [vmem:[%s1 + $0xb0] sm:$0xff]
    %v47 = vld [vmem:[%s1 + $0xb8] sm:$0xff]
    %v48 = vld [vmem:[%s1 + $0xc0] sm:$0xff]
    %v49 = vld [vmem:[%s1 + $0xc8] sm:$0xff]
    %v50 = vld [vmem:[%s1 + $0xd0] sm:$0xff]
    %v51 = vld [vmem:[%s1 + $0xd8] sm:$0xff]
    %v52 = vld [vmem:[%s1 + $0xe0] sm:$0xff]
    %v53 = vld [vmem:[%s1 + $0xe8] sm:$0xff]
    %v54 = vld [vmem:[%s1 + $0xf0] sm:$0xff]
    %v55 = vld [vmem:[%s1 + $0xf8] sm:$0xff]
    %v56 = vld [vmem:[%s1 + $0x100] sm:$0xff]
    %v57 = vld [vmem:[%s1 + $0x108] sm:$0xff]
    %v58 = vld [vmem:[%s1 + $0x110] sm:$0xff]
    %v59 = vld [vmem:[%s1 + $0x118] sm:$0xff]
    %v60 = vld [vmem:[%s1 + $0x120] sm:$0xff]
    %v61 = vld [vmem:[%s1 + $0x128] sm:$0xff]
    %v62 = vld [vmem:[%s1 + $0x130] sm:$0xff]
    %v63 = vld [vmem:[%s1 + $0x138] sm:$0xff]
    %v64 = vld [vmem:[%s1 + $0x140] sm:$0xff]
    %v65 = vld [vmem:[%s1 + $0x148] sm:$0xff]
    %v66 = vld [vmem:[%s1 + $0x150] sm:$0xff]
    %v67 = vld [vmem:[%s1 + $0x158] sm:$0xff]
    %v68 = vld [vmem:[%s1 + $0x160] sm:$0xff]
    %v69 = vld [vmem:[%s1 + $0x168] sm:$0xff]
    %v70 = vld [vmem:[%s1 + $0x170] sm:$0xff]
    %v71 = vld [vmem:[%s1 + $0x178] sm:$0xff]
    %v72 = vld [vmem:[%s1 + $0x180] sm:$0xff]
    %v73 = vld [vmem:[%s1 + $0x188] sm:$0xff]
    %v74 = vld [vmem:[%s1 + $0x190] sm:$0xff]
    %v75 = vld [vmem:[%s1 + $0x198] sm:$0xff]
    %v76 = vld [vmem:[%s1 + $0x1a0] sm:$0xff]
    %v77 = vld [vmem:[%s1 + $0x1a8] sm:$0xff]
    %v78 = vld [vmem:[%s1 + $0x1b0] sm:$0xff]
    %v79 = vld [vmem:[%s1 + $0x1b8] sm:$0xff]
    %v80 = vld [vmem:[%s1 + $0x1c0] sm:$0xff]
    %v81 = vld [vmem:[%s1 + $0x1c8] sm:$0xff]
    %v82 = vld [vmem:[%s1 + $0x1d0] sm:$0xff]
    %v83 = vld [vmem:[%s1 + $0x1d8] sm:$0xff]
    %v84 = vld [vmem:[%s1 + $0x1e0] sm:$0xff]
    %v85 = vld [vmem:[%s1 + $0x1e8] sm:$0xff]
    %v86 = vld [vmem:[%s1 + $0x1f0] sm:$0xff]
    %v87 = vld [vmem:[%s1 + $0x1f8] sm:$0xff]
    %vm88 = vcmask 261120
    %v90 = vsel %vm88, %v22, 0
    %v93 = vsel %vm88, %v23, 0
    %v96 = vsel %vm88, %v24, 0
    %v99 = vsel %vm88, %v25, 0
    %v102 = vsel %vm88, %v26, 0
    %v105 = vsel %vm88, %v27, 0
    %v108 = vsel %vm88, %v28, 0
    %v111 = vsel %vm88, %v29, 0
    %v114 = vsel %vm88, %v30, 0
    %v117 = vsel %vm88, %v31, 0
    %v120 = vsel %vm88, %v32, 0
    %v123 = vsel %vm88, %v33, 0
    %v126 = vsel %vm88, %v34, 0
    %v129 = vsel %vm88, %v35, 0
    %v132 = vsel %vm88, %v36, 0
    %v135 = vsel %vm88, %v37, 0
    %v138 = vsel %vm88, %v38, 0
    %v141 = vsel %vm88, %v39, 0
    %v144 = vsel %vm88, %v40, 0
    %v147 = vsel %vm88, %v41, 0
    %v150 = vsel %vm88, %v42, 0
    %v153 = vsel %vm88, %v43, 0
    %v156 = vsel %vm88, %v44, 0
    %v159 = vsel %vm88, %v45, 0
    %v162 = vsel %vm88, %v46, 0
    %v165 = vsel %vm88, %v47, 0
    %v168 = vsel %vm88, %v48, 0
    %v171 = vsel %vm88, %v49, 0
    %v174 = vsel %vm88, %v50, 0
    %v177 = vsel %vm88, %v51, 0
    %v180 = vsel %vm88, %v52, 0
    %v183 = vsel %vm88, %v53, 0
    %v186 = vsel %vm88, %v54, 0
    %v189 = vsel %vm88, %v55, 0
    %v192 = vsel %vm88, %v56, 0
    %v195 = vsel %vm88, %v57, 0
    %v198 = vsel %vm88, %v58, 0
    %v201 = vsel %vm88, %v59, 0
    %v204 = vsel %vm88, %v60, 0
    %v207 = vsel %vm88, %v61, 0
    %v210 = vsel %vm88, %v62, 0
    %v213 = vsel %vm88, %v63, 0
    %v216 = vsel %vm88, %v64, 0
    %v219 = vsel %vm88, %v65, 0
    %v222 = vsel %vm88, %v66, 0
    %v225 = vsel %vm88, %v67, 0
    %v228 = vsel %vm88, %v68, 0
    %v231 = vsel %vm88, %v69, 0
    %v234 = vsel %vm88, %v70, 0
    %v237 = vsel %vm88, %v71, 0
    %v240 = vsel %vm88, %v72, 0
    %v243 = vsel %vm88, %v73, 0
    %v246 = vsel %vm88, %v74, 0
    %v249 = vsel %vm88, %v75, 0
    %v252 = vsel %vm88, %v76, 0
    %v255 = vsel %vm88, %v77, 0
    %v258 = vsel %vm88, %v78, 0
    %v261 = vsel %vm88, %v79, 0
    %v264 = vsel %vm88, %v80, 0
    %v267 = vsel %vm88, %v81, 0
    %v270 = vsel %vm88, %v82, 0
    %v273 = vsel %vm88, %v83, 0
    %v276 = vsel %vm88, %v84, 0
    %v279 = vsel %vm88, %v85, 0
    %v282 = vsel %vm88, %v86, 0
    %v285 = vsel %vm88, %v87, 0
    %287 = vmatprep.subr.mxu0 0.0
    %288 = vmatpush1.xpose.msra.mxu0 %v141
    %289 = vmatprep.subr.mxu0 0.0
    %290 = vmatpush1.xpose.msra.mxu0 %v138
    %291 = vmatprep.subr.mxu0 0.0
    %292 = vmatpush1.xpose.msra.mxu0 %v135
    %293 = vmatprep.subr.mxu0 0.0
    %294 = vmatpush1.xpose.msra.mxu0 %v132
    %295 = vmatprep.subr.mxu0 0.0
    %296 = vmatpush1.xpose.msra.mxu0 %v129
    %297 = vmatprep.subr.mxu0 0.0
    %298 = vmatpush1.xpose.msra.mxu0 %v126
    %299 = vmatprep.subr.mxu0 0.0
    %300 = vmatpush1.xpose.msra.mxu0 %v123
    %301 = vmatprep.subr.mxu0 0.0
    %302 = vmatpush1.xpose.msra.mxu0 %v120
    %303 = vmatprep.subr.mxu0 0.0
    %304 = vmatpush1.xpose.msra.mxu0 %v117
    %305 = vmatprep.subr.mxu0 0.0
    %306 = vmatpush1.xpose.msra.mxu0 %v114
    %307 = vmatprep.subr.mxu0 0.0
    %308 = vmatpush1.xpose.msra.mxu0 %v111
    %309 = vmatprep.subr.mxu0 0.0
    %310 = vmatpush1.xpose.msra.mxu0 %v108
    %311 = vmatprep.subr.mxu0 0.0
    %312 = vmatpush1.xpose.msra.mxu0 %v105
    %313 = vmatprep.subr.mxu0 0.0
    %314 = vmatpush1.xpose.msra.mxu0 %v102
    %315 = vmatprep.subr.mxu0 0.0
    %316 = vmatpush1.xpose.msra.mxu0 %v99
    %317 = vmatprep.subr.mxu0 0.0
    %318 = vmatpush1.xpose.msra.mxu0 %v96
    %319 = vmatprep.subr.mxu0 0.0
    %320 = vmatpush2.xpose.msra.mxu0 %v189
    %321 = vmatprep.subr.mxu0 0.0
    %322 = vmatpush2.xpose.msra.mxu0 %v186
    %323 = vmatprep.subr.mxu0 0.0
    %324 = vmatpush2.xpose.msra.mxu0 %v183
    %325 = vmatprep.subr.mxu0 0.0
    %326 = vmatpush2.xpose.msra.mxu0 %v180
    %327 = vmatprep.subr.mxu0 0.0
    %328 = vmatpush2.xpose.msra.mxu0 %v177
    %329 = vmatprep.subr.mxu0 0.0
    %330 = vmatpush2.xpose.msra.mxu0 %v174
    %331 = vmatprep.subr.mxu0 0.0
    %332 = vmatpush2.xpose.msra.mxu0 %v171
    %333 = vmatprep.subr.mxu0 0.0
    %334 = vmatpush2.xpose.msra.mxu0 %v168
    %335 = vmatprep.subr.mxu0 0.0
    %336 = vmatpush2.xpose.msra.mxu0 %v165
    %337 = vmatprep.subr.mxu0 0.0
    %338 = vmatpush2.xpose.msra.mxu0 %v162
    %339 = vmatprep.subr.mxu0 0.0
    %340 = vmatpush2.xpose.msra.mxu0 %v159
    %341 = vmatprep.subr.mxu0 0.0
    %342 = vmatpush2.xpose.msra.mxu0 %v156
    %343 = vmatprep.subr.mxu0 0.0
    %344 = vmatpush2.xpose.msra.mxu0 %v153
    %345 = vmatprep.subr.mxu0 0.0
    %346 = vmatpush2.xpose.msra.mxu0 %v150
    %347 = vmatprep.subr.mxu0 0.0
    %348 = vmatpush2.xpose.msra.mxu0 %v147
    %349 = vmatprep.subr.mxu0 0.0
    %350 = vmatpush2.xpose.msra.mxu0 %v144
    %351 = vmatprep.mubr.f32.mxu0 0.0
    %352 = vmatmul.mubr.f32.gmra.mxu0 %v90
    %v353 = vpop.f32.mrf.mxu0
    %v354 = vadd.f32 0.0, %v353
    %v355 = vpop.f32.mrf.mxu0
    %v356 = vadd.f32 0.0, %v355
    %357 = vmatprep.mubr.f32.mxu0 0.0
    %358 = vmatmul.mubr.f32.gmra.mxu0 %v93
    %v359 = vpop.f32.mrf.mxu0
    %v360 = vadd.f32 0.0, %v359
    %v361 = vpop.f32.mrf.mxu0
    %v362 = vadd.f32 0.0, %v361
    %363 = vdwg.mxu0
    %364 = vmatprep.subr.mxu0 0.0
    %365 = vmatpush1.xpose.msra.mxu0 %v237
    %366 = vmatprep.subr.mxu0 0.0
    %367 = vmatpush1.xpose.msra.mxu0 %v234
    %368 = vmatprep.subr.mxu0 0.0
    %369 = vmatpush1.xpose.msra.mxu0 %v231
    %370 = vmatprep.subr.mxu0 0.0
    %371 = vmatpush1.xpose.msra.mxu0 %v228
    %372 = vmatprep.subr.mxu0 0.0
    %373 = vmatpush1.xpose.msra.mxu0 %v225
    %374 = vmatprep.subr.mxu0 0.0
    %375 = vmatpush1.xpose.msra.mxu0 %v222
    %376 = vmatprep.subr.mxu0 0.0
    %377 = vmatpush1.xpose.msra.mxu0 %v219
    %378 = vmatprep.subr.mxu0 0.0
    %379 = vmatpush1.xpose.msra.mxu0 %v216
    %380 = vmatprep.subr.mxu0 0.0
    %381 = vmatpush1.xpose.msra.mxu0 %v213
    %382 = vmatprep.subr.mxu0 0.0
    %383 = vmatpush1.xpose.msra.mxu0 %v210
    %384 = vmatprep.subr.mxu0 0.0
    %385 = vmatpush1.xpose.msra.mxu0 %v207
    %386 = vmatprep.subr.mxu0 0.0
    %387 = vmatpush1.xpose.msra.mxu0 %v204
    %388 = vmatprep.subr.mxu0 0.0
    %389 = vmatpush1.xpose.msra.mxu0 %v201
    %390 = vmatprep.subr.mxu0 0.0
    %391 = vmatpush1.xpose.msra.mxu0 %v198
    %392 = vmatprep.subr.mxu0 0.0
    %393 = vmatpush1.xpose.msra.mxu0 %v195
    %394 = vmatprep.subr.mxu0 0.0
    %395 = vmatpush1.xpose.msra.mxu0 %v192
    %396 = vmatprep.subr.mxu0 0.0
    %397 = vmatpush2.xpose.msra.mxu0 %v285
    %398 = vmatprep.subr.mxu0 0.0
    %399 = vmatpush2.xpose.msra.mxu0 %v282
    %400 = vmatprep.subr.mxu0 0.0
    %401 = vmatpush2.xpose.msra.mxu0 %v279
    %402 = vmatprep.subr.mxu0 0.0
    %403 = vmatpush2.xpose.msra.mxu0 %v276
    %404 = vmatprep.subr.mxu0 0.0
    %405 = vmatpush2.xpose.msra.mxu0 %v273
    %406 = vmatprep.subr.mxu0 0.0
    %407 = vmatpush2.xpose.msra.mxu0 %v270
    %408 = vmatprep.subr.mxu0 0.0
    %409 = vmatpush2.xpose.msra.mxu0 %v267
    %410 = vmatprep.subr.mxu0 0.0
    %411 = vmatpush2.xpose.msra.mxu0 %v264
    %412 = vmatprep.subr.mxu0 0.0
    %413 = vmatpush2.xpose.msra.mxu0 %v261
    %414 = vmatprep.subr.mxu0 0.0
    %415 = vmatpush2.xpose.msra.mxu0 %v258
    %416 = vmatprep.subr.mxu0 0.0
    %417 = vmatpush2.xpose.msra.mxu0 %v255
    %418 = vmatprep.subr.mxu0 0.0
    %419 = vmatpush2.xpose.msra.mxu0 %v252
    %420 = vmatprep.subr.mxu0 0.0
    %421 = vmatpush2.xpose.msra.mxu0 %v249
    %422 = vmatprep.subr.mxu0 0.0
    %423 = vmatpush2.xpose.msra.mxu0 %v246
    %424 = vmatprep.subr.mxu0 0.0
    %425 = vmatpush2.xpose.msra.mxu0 %v243
    %426 = vmatprep.subr.mxu0 0.0
    %427 = vmatpush2.xpose.msra.mxu0 %v240
    %428 = vmatprep.mubr.f32.mxu0 0.0
    %429 = vmatmul.mubr.f32.gmra.mxu0 %v90
    %v430 = vpop.f32.mrf.mxu0
    %v431 = vadd.f32 0.0, %v430
    %v432 = vpop.f32.mrf.mxu0
    %v433 = vadd.f32 0.0, %v432
    %434 = vmatprep.mubr.f32.mxu0 0.0
    %435 = vmatmul.mubr.f32.gmra.mxu0 %v93
    %v436 = vpop.f32.mrf.mxu0
    %v437 = vadd.f32 0.0, %v436
    %v438 = vpop.f32.mrf.mxu0
    %v439 = vadd.f32 0.0, %v438
    %440 = vdwg.mxu0
    %v441 = vxor.u32 %v354, 2147483648
    %v442 = vxor.u32 %v356, 2147483648
    %v443 = vxor.u32 %v360, 2147483648
    %v444 = vxor.u32 %v362, 2147483648
    %v445 = vmul.f32 %v441, 1.442695
    %v446 = vpow.pop %v445
    %v447 = vmul.f32 %v442, 1.442695
    %v448 = vpow.pop %v447
    %v449 = vmul.f32 %v443, 1.442695
    %v450 = vpow.pop %v449
    %v451 = vmul.f32 %v444, 1.442695
    %v452 = vpow.pop %v451
    %v453 = vadd.f32 %v446, 1.0
    %v454 = vadd.f32 %v448, 1.0
    %v455 = vadd.f32 %v450, 1.0
    %v456 = vadd.f32 %v452, 1.0
    %v457 = vrcp.pop %v453
    %v458 = vmul.f32 1.0, %v457
    %v459 = vrcp.pop %v454
    %v460 = vmul.f32 1.0, %v459
    %v461 = vrcp.pop %v455
    %v462 = vmul.f32 1.0, %v461
    %v463 = vrcp.pop %v456
    %v464 = vmul.f32 1.0, %v463
    %v465 = vmul.f32 %v354, %v458
    %v466 = vmul.f32 %v356, %v460
    %v467 = vmul.f32 %v360, %v462
    %v468 = vmul.f32 %v362, %v464
    %v469 = vmul.f32 %v465, %v431
    %v470 = vmul.f32 %v466, %v433
    %v471 = vmul.f32 %v467, %v437
    %v472 = vmul.f32 %v468, %v439
    %v473 = vld [vmem:[#allocation2] sm:$0xff]
    %v474 = vld [vmem:[#allocation2 + $0x8] sm:$0xff]
    %v475 = vld [vmem:[%s2] sm:$0xff]
    %v476 = vld [vmem:[%s2 + $0x8] sm:$0xff]
    %v477 = vld [vmem:[%s2 + $0x10] sm:$0xff]
    %v478 = vld [vmem:[%s2 + $0x18] sm:$0xff]
    %v479 = vld [vmem:[%s2 + $0x20] sm:$0xff]
    %v480 = vld [vmem:[%s2 + $0x28] sm:$0xff]
    %v481 = vld [vmem:[%s2 + $0x30] sm:$0xff]
    %v482 = vld [vmem:[%s2 + $0x38] sm:$0xff]
    %v483 = vld [vmem:[%s2 + $0x40] sm:$0xff]
    %v484 = vld [vmem:[%s2 + $0x48] sm:$0xff]
    %v485 = vld [vmem:[%s2 + $0x50] sm:$0xff]
    %v486 = vld [vmem:[%s2 + $0x58] sm:$0xff]
    %v487 = vld [vmem:[%s2 + $0x60] sm:$0xff]
    %v488 = vld [vmem:[%s2 + $0x68] sm:$0xff]
    %v489 = vld [vmem:[%s2 + $0x70] sm:$0xff]
    %v490 = vld [vmem:[%s2 + $0x78] sm:$0xff]
    %v491 = vld [vmem:[%s2 + $0x80] sm:$0xff]
    %v492 = vld [vmem:[%s2 + $0x88] sm:$0xff]
    %v493 = vld [vmem:[%s2 + $0x90] sm:$0xff]
    %v494 = vld [vmem:[%s2 + $0x98] sm:$0xff]
    %v495 = vld [vmem:[%s2 + $0xa0] sm:$0xff]
    %v496 = vld [vmem:[%s2 + $0xa8] sm:$0xff]
    %v497 = vld [vmem:[%s2 + $0xb0] sm:$0xff]
    %v498 = vld [vmem:[%s2 + $0xb8] sm:$0xff]
    %v499 = vld [vmem:[%s2 + $0xc0] sm:$0xff]
    %v500 = vld [vmem:[%s2 + $0xc8] sm:$0xff]
    %v501 = vld [vmem:[%s2 + $0xd0] sm:$0xff]
    %v502 = vld [vmem:[%s2 + $0xd8] sm:$0xff]
    %v503 = vld [vmem:[%s2 + $0xe0] sm:$0xff]
    %v504 = vld [vmem:[%s2 + $0xe8] sm:$0xff]
    %v505 = vld [vmem:[%s2 + $0xf0] sm:$0xff]
    %v506 = vld [vmem:[%s2 + $0xf8] sm:$0xff]
    %507 = vmatprep.subr.mxu0 0.0
    %508 = vmatpush1.msra.mxu0 %v490
    %509 = vmatprep.subr.mxu0 0.0
    %510 = vmatpush1.msra.mxu0 %v489
    %511 = vmatprep.subr.mxu0 0.0
    %512 = vmatpush1.msra.mxu0 %v488
    %513 = vmatprep.subr.mxu0 0.0
    %514 = vmatpush1.msra.mxu0 %v487
    %515 = vmatprep.subr.mxu0 0.0
    %516 = vmatpush1.msra.mxu0 %v486
    %517 = vmatprep.subr.mxu0 0.0
    %518 = vmatpush1.msra.mxu0 %v485
    %519 = vmatprep.subr.mxu0 0.0
    %520 = vmatpush1.msra.mxu0 %v484
    %521 = vmatprep.subr.mxu0 0.0
    %522 = vmatpush1.msra.mxu0 %v483
    %523 = vmatprep.subr.mxu0 0.0
    %524 = vmatpush1.msra.mxu0 %v482
    %525 = vmatprep.subr.mxu0 0.0
    %526 = vmatpush1.msra.mxu0 %v481
    %527 = vmatprep.subr.mxu0 0.0
    %528 = vmatpush1.msra.mxu0 %v480
    %529 = vmatprep.subr.mxu0 0.0
    %530 = vmatpush1.msra.mxu0 %v479
    %531 = vmatprep.subr.mxu0 0.0
    %532 = vmatpush1.msra.mxu0 %v478
    %533 = vmatprep.subr.mxu0 0.0
    %534 = vmatpush1.msra.mxu0 %v477
    %535 = vmatprep.subr.mxu0 0.0
    %536 = vmatpush1.msra.mxu0 %v476
    %537 = vmatprep.subr.mxu0 0.0
    %538 = vmatpush1.msra.mxu0 %v475
    %539 = vmatprep.subr.mxu0 0.0
    %540 = vmatpush2.msra.mxu0 %v506
    %541 = vmatprep.subr.mxu0 0.0
    %542 = vmatpush2.msra.mxu0 %v505
    %543 = vmatprep.subr.mxu0 0.0
    %544 = vmatpush2.msra.mxu0 %v504
    %545 = vmatprep.subr.mxu0 0.0
    %546 = vmatpush2.msra.mxu0 %v503
    %547 = vmatprep.subr.mxu0 0.0
    %548 = vmatpush2.msra.mxu0 %v502
    %549 = vmatprep.subr.mxu0 0.0
    %550 = vmatpush2.msra.mxu0 %v501
    %551 = vmatprep.subr.mxu0 0.0
    %552 = vmatpush2.msra.mxu0 %v500
    %553 = vmatprep.subr.mxu0 0.0
    %554 = vmatpush2.msra.mxu0 %v499
    %555 = vmatprep.subr.mxu0 0.0
    %556 = vmatpush2.msra.mxu0 %v498
    %557 = vmatprep.subr.mxu0 0.0
    %558 = vmatpush2.msra.mxu0 %v497
    %559 = vmatprep.subr.mxu0 0.0
    %560 = vmatpush2.msra.mxu0 %v496
    %561 = vmatprep.subr.mxu0 0.0
    %562 = vmatpush2.msra.mxu0 %v495
    %563 = vmatprep.subr.mxu0 0.0
    %564 = vmatpush2.msra.mxu0 %v494
    %565 = vmatprep.subr.mxu0 0.0
    %566 = vmatpush2.msra.mxu0 %v493
    %567 = vmatprep.subr.mxu0 0.0
    %568 = vmatpush2.msra.mxu0 %v492
    %569 = vmatprep.subr.mxu0 0.0
    %570 = vmatpush2.msra.mxu0 %v491
    %571 = vmatprep.mubr.f32.mxu0 %v470
    %572 = vmatmul.mubr.f32.gmra.mxu0 %v469
    %v573 = vpop.f32.mrf.mxu0
    %v574 = vadd.f32 0.0, %v573
    %v575 = vpop.f32.mrf.mxu0
    %576 = vmatprep.mubr.f32.mxu0 %v472
    %577 = vmatmul.mubr.f32.gmra.mxu0 %v471
    %v578 = vpop.f32.mrf.mxu0
    %v579 = vadd.f32 0.0, %v578
    %v580 = vpop.f32.mrf.mxu0
    %581 = vdwg.mxu0
    %v582 = vadd.f32 %v473, %v574
    %v583 = vadd.f32 %v474, %v579
    %584 = vst.msk [vmem:[#allocation2] sm:$0xff] %vm88, %v582
    %585 = vst.msk [vmem:[#allocation2 + $0x8] sm:$0xff] %vm88, %v583
    // Predicated region
    $region18: #{tpu_custom_call.1} parent=1 // pred_check
      %p586 = pneg %p15
    $region19: #{tpu_custom_call.1} parent=1 // pred_check_branch
      %588 = sbr.rel (%p586) target = $region21
    $region20: #{tpu_custom_call.1} parent=1 // pred_region
      %v589 = vld [vmem:[#allocation2] sm:$0xff]
      %v590 = vld [vmem:[#allocation2 + $0x8] sm:$0xff]
      %591 = vst.msk [vmem:[#allocation3] sm:$0xff] %vm88, %v589
      %592 = vst.msk [vmem:[#allocation3 + $0x8] sm:$0xff] %vm88, %v590
    $region21: #{tpu_custom_call.1} parent=1 // pred_fallthru
      _
    // Predicated region
    $region22: #{tpu_custom_call.1} parent=1 // pred_check
      _
    $region23: #{tpu_custom_call.1} parent=1 // pred_check_branch
      %594 = sbr.rel (0) target = $region25
    $region24: #{tpu_custom_call.1} parent=1 // pred_region
      %s596 = ssub.s32 256, 256
      %597 = vsyncadd [#allocation4], %s596
      %s598 = sshll.u32 [#allocation3], 4
      %s599 = int_to_ptr.vmem [resolvable:$true] %s598
      %604 = dma.vmem_to_hbm [thread:$0]  %s599, 256, %s3, [#allocation4], 128, 128, 8
    $region25: #{tpu_custom_call.1} parent=1 // pred_fallthru
      _
    // Predicated region
    $region26: #{tpu_custom_call.1} parent=1 // pred_check
      _
    $region27: #{tpu_custom_call.1} parent=1 // pred_check_branch
      %606 = sbr.rel (0) target = $region29
    $region28: #{tpu_custom_call.1} parent=1 // pred_region
      %607 = dma.done [#allocation4], 256
    $region29: #{tpu_custom_call.1} parent=1 // pred_fallthru
      _
    %608 = vsyncpa [#allocation4], 1

</llo_original>
